<compile_context>
chip_gen: v7x
topology: tpu7x:2x2x1
jax: 0.10.0
libtpu: 0.0.40
codegen_flags: <defaults>
</compile_context>

<pallas_src>
import jax
import jax.numpy as jnp
from jax import lax
from jax.experimental import pallas as pl
from jax.experimental.pallas import tpu as pltpu

LANE = 128
STRIP = 128                              # epilogue strip rows (bounds live f32 regs)
TK_MAX = 512                             # max contraction tile
WEIGHT_RESIDENT_MAX = 8 * 1024 * 1024    # keep full weight in VMEM up to this size


def _round_up(x, m):
    return ((x + m - 1) // m) * m


def _pick_vmem_limit():
    # v5e/v6e have 128 MiB physical VMEM, v7x only 64 MiB: cap the scoped limit
    # at half the physical capacity so the compiler keeps headroom everywhere.
    try:
        cap = int(getattr(pltpu.get_tpu_info(), "vmem_capacity_bytes",
                          128 * 1024 * 1024))
    except Exception:
        cap = 128 * 1024 * 1024
    return min(48 * 1024 * 1024, max(16 * 1024 * 1024, cap // 2))


VMEM_LIMIT = _pick_vmem_limit()


def _stats_epilogue(acc_rows_fn, conv_ref, sum_ref, ssq_ref, n_strips):
    """Strip-mined cast-to-output + channel sum / sum-of-squares.

    Processing STRIP rows at a time keeps the live f32 value to a few vregs and
    lets the XLU reductions overlap the stores.
    """
    cp = conv_ref.shape[1]
    zero = jnp.zeros((1, cp), jnp.float32)

    def body(s, carry):
        ssum, sssq = carry
        r = pl.multiple_of(s * STRIP, STRIP)
        a = acc_rows_fn(r)                                  # (STRIP, cp) f32
        conv_ref[pl.ds(r, STRIP), :] = a.astype(conv_ref.dtype)
        return (ssum + jnp.sum(a, axis=0, keepdims=True),
                sssq + jnp.sum(a * a, axis=0, keepdims=True))

    ssum, sssq = lax.fori_loop(0, n_strips, body, (zero, zero))
    # One lane-dense (8, cp) write per M block (all sublanes identical); the
    # wrapper reads sublane 0 and reduces over M blocks in XLA.
    sum_ref[...] = jnp.broadcast_to(ssum, sum_ref.shape)
    ssq_ref[...] = jnp.broadcast_to(sssq, ssq_ref.shape)


def make_conv_stats_single(tm):
    """gk == 1 (K fits one tile): no f32 scratch, no accumulator RMW."""
    n_strips = tm // STRIP

    def kernel(p_ref, w_ref, conv_ref, sum_ref, ssq_ref):
        def acc_rows(r):
            return jnp.dot(p_ref[pl.ds(r, STRIP), :], w_ref[...],
                           preferred_element_type=jnp.float32)
        _stats_epilogue(acc_rows, conv_ref, sum_ref, ssq_ref, n_strips)

    return kernel


def make_conv_stats_multi(tm, tk, weight_resident):
    """gk > 1: K-tiled accumulation in an f32 VMEM scratch."""
    n_strips = tm // STRIP

    def kernel(p_ref, w_ref, conv_ref, sum_ref, ssq_ref, acc_ref):
        k = pl.program_id(1)

        @pl.when(k == 0)
        def _():
            acc_ref[...] = jnp.zeros_like(acc_ref)

        if weight_resident:
            # whole (Kpad, CP) weight lives in VMEM; slice the current K tile.
            koff = pl.multiple_of(k * tk, LANE)
            w = w_ref[pl.ds(koff, tk), :]
        else:
            w = w_ref[...]
        acc_ref[...] += jnp.dot(p_ref[...], w,
                                preferred_element_type=jnp.float32)

        @pl.when(k == pl.num_programs(1) - 1)
        def _():
            _stats_epilogue(lambda r: acc_ref[pl.ds(r, STRIP), :],
                            conv_ref, sum_ref, ssq_ref, n_strips)

    return kernel


def bn_act_kernel(conv_ref, scale_ref, bias_ref, out_ref):
    # BN affine + Hardswish in f32 (v5e VPU/EUP have no bf16 path).
    y = conv_ref[...].astype(jnp.float32) * scale_ref[...] + bias_ref[...]
    out_ref[...] = (y * jnp.clip(y + 3.0, 0.0, 6.0) * (1.0 / 6.0)).astype(out_ref.dtype)


def _im2col(x, kh, kw, stride, padding):
    N, C, H, W = x.shape
    xp = jnp.pad(x, ((0, 0), (0, 0), (padding, padding), (padding, padding)))
    OH = (H + 2 * padding - kh) // stride + 1
    OW = (W + 2 * padding - kw) // stride + 1
    cols = []
    for i in range(kh):
        for j in range(kw):
            cols.append(xp[:, :, i:i + stride * OH:stride, j:j + stride * OW:stride])
    p = jnp.stack(cols, axis=2)                     # (N, C, kh*kw, OH, OW)
    p = p.reshape(N, C * kh * kw, OH, OW)           # K index = c*kh*kw + i*kw + j
    p = p.transpose(0, 2, 3, 1).reshape(N * OH * OW, C * kh * kw)
    return p, OH, OW


def conv_bn_hardswish(x, weight, gamma, beta, *, stride=1, padding=0, eps=1e-5,
                      out_layout="NCHW", out_dtype=jnp.float32,
                      compute_dtype=jnp.bfloat16):
    # TODO(synk): groups > 1 (grouped conv) not implemented; ConvBNLayer default
    #             groups=1 is what CSPResNet uses.
    # TODO(synk): implicit im2col (NHWC input tile + kh*kw shifted MXU dots
    #             inside the kernel) would remove the kh*kw patch-byte inflation
    #             for 3x3 layers; the explicit im2col below is done in bf16.
    # When chaining ConvBNLayer calls, pass out_layout="NHWC" and
    # out_dtype=compute_dtype: skips the NCHW transpose HBM pass and halves the
    # downstream layer's input bytes.
    N, Cin, H, W = x.shape
    Cout, Cin_w, kh, kw = weight.shape
    assert Cin_w == Cin, "grouped conv (groups > 1) not supported"

    patches, OH, OW = _im2col(x.astype(compute_dtype), kh, kw, stride, padding)
    M, K = patches.shape

    CP = _round_up(Cout, LANE)

    # K padded only to the lane width; TK = largest 128-multiple dividing Kpad.
    Kpad = _round_up(K, LANE)
    if Kpad <= TK_MAX:
        TK, gk = Kpad, 1
    else:
        TK = LANE
        for t in (512, 384, 256, 128):
            if Kpad % t == 0:
                TK = t
                break
        gk = Kpad // TK

    # Keep >= 2 M blocks when possible so the "parallel" axis load-balances
    # across both TensorCores on v7x (and the megacore on v6e).
    TM1 = 128
    for t in (512, 256, 128):
        if pl.cdiv(M, t) >= 2 or t == 128:
            TM1 = t
            break
    Mpad = _round_up(M, TM1)
    gm = Mpad // TM1

    # Zero padding of M rows / K columns is load-bearing for the batch stats:
    # the conv is bias-free, so padded entries contribute exactly 0 to sum/ssq.
    patches = jnp.pad(patches, ((0, Mpad - M), (0, Kpad - K)))
    w2d = jnp.pad(weight.reshape(Cout, K).T.astype(compute_dtype),
                  ((0, Kpad - K), (0, CP - Cout)))              # (Kpad, CP)

    itemsize = jnp.dtype(compute_dtype).itemsize
    weight_resident = (Kpad * CP * itemsize) <= WEIGHT_RESIDENT_MAX

    # Deeper patch pipelining for narrow-Cout layers (DMA-exposed on v5e), only
    # when the pipeline is long enough for the extra buffer to matter.
    if CP <= 256 and gm * gk >= 4:
        patch_kwargs = dict(pipeline_mode=pl.Buffered(3))
    else:
        patch_kwargs = {}

    if gk == 1:
        grid = (gm,)
        in_specs = [
            pl.BlockSpec((TM1, TK), lambda i: (i, 0), **patch_kwargs),
            pl.BlockSpec((Kpad, CP), lambda i: (0, 0)),          # fetched once
        ]
        out_specs = [
            pl.BlockSpec((TM1, CP), lambda i: (i, 0)),
            pl.BlockSpec((8, CP), lambda i: (i, 0)),
            pl.BlockSpec((8, CP), lambda i: (i, 0)),
        ]
        scratch_shapes = []
        kernel = make_conv_stats_single(TM1)
        dim_sem = ("parallel",)
        weight_bytes = Kpad * CP * itemsize
    else:
        grid = (gm, gk)
        if weight_resident:
            w_spec = pl.BlockSpec((Kpad, CP), lambda i, k: (0, 0))   # VMEM-resident
            weight_bytes = Kpad * CP * itemsize
        else:
            w_spec = pl.BlockSpec((TK, CP), lambda i, k: (k, 0))
            weight_bytes = gm * Kpad * CP * itemsize                 # re-fetched per M block
        in_specs = [
            pl.BlockSpec((TM1, TK), lambda i, k: (i, k), **patch_kwargs),
            w_spec,
        ]
        out_specs = [
            pl.BlockSpec((TM1, CP), lambda i, k: (i, 0)),
            pl.BlockSpec((8, CP), lambda i, k: (i, 0)),
            pl.BlockSpec((8, CP), lambda i, k: (i, 0)),
        ]
        scratch_shapes = [pltpu.VMEM((TM1, CP), jnp.float32)]
        kernel = make_conv_stats_multi(TM1, TK, weight_resident)
        dim_sem = ("parallel", "arbitrary")

    cost = pl.CostEstimate(
        flops=2 * Mpad * Kpad * CP,
        transcendentals=0,
        bytes_accessed=(Mpad * Kpad * itemsize + weight_bytes
                        + Mpad * CP * itemsize + 2 * gm * 8 * CP * 4),
    )

    conv, psum, pssq = pl.pallas_call(
        kernel,
        out_shape=(
            jax.ShapeDtypeStruct((Mpad, CP), compute_dtype),    # conv (bf16)
            jax.ShapeDtypeStruct((gm * 8, CP), jnp.float32),    # per-block sum
            jax.ShapeDtypeStruct((gm * 8, CP), jnp.float32),    # per-block ssq
        ),
        grid_spec=pltpu.PrefetchScalarGridSpec(
            num_scalar_prefetch=0,
            grid=grid,
            in_specs=in_specs,
            out_specs=out_specs,
            scratch_shapes=scratch_shapes,
        ),
        compiler_params=pltpu.CompilerParams(
            dimension_semantics=dim_sem,
            vmem_limit_bytes=VMEM_LIMIT,
        ),
        cost_estimate=cost,
    )(patches, w2d)

    # BatchNorm2d forward (training mode): biased batch stats over (N, OH, OW).
    csum = jnp.sum(psum.reshape(gm, 8, CP)[:, 0, :], axis=0)
    cssq = jnp.sum(pssq.reshape(gm, 8, CP)[:, 0, :], axis=0)
    mean = csum / M
    # E[x^2] - E[x]^2 in f32 with a clamp against cancellation.  Note: scale /
    # bias are derived from the f32 accumulator but applied to the bf16-rounded
    # conv intermediate in kernel 2 (intentional small mismatch vs pure-f32).
    var = jnp.maximum(cssq / M - mean * mean, 0.0)
    gamma_p = jnp.pad(gamma.astype(jnp.float32), (0, CP - Cout))
    beta_p = jnp.pad(beta.astype(jnp.float32), (0, CP - Cout))
    inv = lax.rsqrt(var + eps)
    scale = (gamma_p * inv).reshape(1, CP)
    bias = (beta_p - mean * gamma_p * inv).reshape(1, CP)

    # Elementwise tile sized by bytes (~<= 6 MiB per live buffer) — measured
    # roofline data shows 512-1024 row tiles already saturate HBM, and smaller
    # tiles keep v7x's 64 MiB VMEM comfortable.
    out_bytes = jnp.dtype(out_dtype).itemsize
    TM2 = 128
    for t in (2048, 1024, 512, 256, 128):
        if Mpad % t == 0 and t * CP * (itemsize + out_bytes) <= 6 * 1024 * 1024:
            TM2 = t
            break

    out2d = pl.pallas_call(
        bn_act_kernel,
        out_shape=jax.ShapeDtypeStruct((Mpad, CP), out_dtype),
        grid_spec=pltpu.PrefetchScalarGridSpec(
            num_scalar_prefetch=0,
            grid=(Mpad // TM2,),
            in_specs=[
                pl.BlockSpec((TM2, CP), lambda i: (i, 0)),
                pl.BlockSpec((1, CP), lambda i: (0, 0)),
                pl.BlockSpec((1, CP), lambda i: (0, 0)),
            ],
            out_specs=pl.BlockSpec((TM2, CP), lambda i: (i, 0)),
        ),
        compiler_params=pltpu.CompilerParams(
            dimension_semantics=("parallel",),
            vmem_limit_bytes=VMEM_LIMIT,
        ),
    )(conv, scale, bias)

    out = out2d[:M, :Cout].reshape(N, OH, OW, Cout)             # NHWC
    if out_layout == "NHWC":
        return out        # channels-last: skip the transpose pass when chaining
    return out.transpose(0, 3, 1, 2)                            # NCHW (PyTorch layout)


def reference(x, weight, gamma, beta, *, stride=1, padding=0, eps=1e-5):
    conv = lax.conv_general_dilated(
        x.astype(jnp.float32), weight.astype(jnp.float32),
        window_strides=(stride, stride),
        padding=[(padding, padding), (padding, padding)],
        dimension_numbers=("NCHW", "OIHW", "NCHW"))
    mean = conv.mean(axis=(0, 2, 3), keepdims=True)
    var = conv.var(axis=(0, 2, 3), keepdims=True)   # biased, as PyTorch BN normalization
    y = (conv - mean) / jnp.sqrt(var + eps)
    y = y * gamma.reshape(1, -1, 1, 1) + beta.reshape(1, -1, 1, 1)
    return y * jnp.clip(y + 3.0, 0.0, 6.0) / 6.0


if __name__ == "__main__":
    key = jax.random.PRNGKey(0)
    kx, kw_, kg, kb = jax.random.split(key, 4)

    N, Cin, H, W = 2, 4, 16, 16
    Cout, ksize, stride, padding = 8, 3, 1, 0   # ConvBNLayer(4, 8) with defaults

    x = jax.random.normal(kx, (N, Cin, H, W), dtype=jnp.float32)
    weight = jax.random.normal(kw_, (Cout, Cin, ksize, ksize), dtype=jnp.float32) * 0.1
    gamma = 1.0 + 0.1 * jax.random.normal(kg, (Cout,), dtype=jnp.float32)
    beta = 0.1 * jax.random.normal(kb, (Cout,), dtype=jnp.float32)

    out = conv_bn_hardswish(x, weight, gamma, beta, stride=stride, padding=padding)
    out = jax.block_until_ready(out)

    ref = reference(x, weight, gamma, beta, stride=stride, padding=padding)
    assert out.shape == ref.shape == (N, Cout, H - ksize + 1, W - ksize + 1)
    max_err = float(jnp.max(jnp.abs(out - ref)))
    # bf16 matmul operands + bf16 conv intermediate vs pure-f32 reference
    assert jnp.allclose(out, ref, atol=5e-2, rtol=5e-2), max_err

    print("KERNEL_OK")
</pallas_src>

<mosaic_0001>
module attributes {stable_mosaic.version = 11 : i64} {
  func.func @kernel(%arg0: i32, %arg1: memref<256x128xbf16, #tpu.memory_space<vmem>>, %arg2: memref<128x128xbf16, #tpu.memory_space<vmem>>, %arg3: memref<256x128xbf16, #tpu.memory_space<vmem>>, %arg4: memref<8x128xf32, #tpu.memory_space<vmem>>, %arg5: memref<8x128xf32, #tpu.memory_space<vmem>>) attributes {dimension_semantics = [#tpu.dimension_semantics<parallel>], iteration_bounds = array<i64: 2>, scalar_prefetch = 0 : i64, scratch_operands = 0 : i64, tpu.core_type = #tpu.core_type<tc>, window_params = [{transform_indices = @transform_0, window_bounds = array<i64: 256, 128>}, {pipeline_mode = #tpu.pipeline_mode<synchronous>, transform_indices = @transform_1, window_bounds = array<i64: 128, 128>}, {transform_indices = @transform_2, window_bounds = array<i64: 256, 128>}, {transform_indices = @transform_3, window_bounds = array<i64: 8, 128>}, {transform_indices = @transform_4, window_bounds = array<i64: 8, 128>}]} {
    %cst = arith.constant 0.000000e+00 : f32
    %0 = vector.broadcast %cst : f32 to vector<1x128xf32>
    %c0_i32 = arith.constant 0 : i32
    %c2_i32 = arith.constant 2 : i32
    %1 = arith.addi %c0_i32, %c2_i32 : i32
    %c1_i32 = arith.constant 1 : i32
    %2:2 = scf.for %arg6 = %c0_i32 to %1 step %c1_i32 iter_args(%arg7 = %0, %arg8 = %0) -> (vector<1x128xf32>, vector<1x128xf32>)  : i32 {
      %c128_i32 = arith.constant 128 : i32
      %9 = arith.muli %arg6, %c128_i32 : i32
      %10 = tpu.assume_multiple %9, 128 : i32
      %11 = arith.index_cast %10 : i32 to index
      %c0_4 = arith.constant 0 : index
      %12 = vector.load %arg1[%11, %c0_4] : memref<256x128xbf16, #tpu.memory_space<vmem>>, vector<128x128xbf16>
      %c0_5 = arith.constant 0 : index
      %c0_6 = arith.constant 0 : index
      %13 = vector.load %arg2[%c0_5, %c0_6] : memref<128x128xbf16, #tpu.memory_space<vmem>>, vector<128x128xbf16>
      %cst_7 = arith.constant dense<0.000000e+00> : vector<128x128xf32>
      %14 = tpu.matmul %12, %13, %cst_7 {dimension_numbers = #tpu.dot_dimension_numbers<[1], [0], [0], [1], [0, 0, 1, 1], [], []>} : vector<128x128xbf16>, vector<128x128xbf16>, vector<128x128xf32> -> vector<128x128xf32>
      %15 = arith.truncf %14 : vector<128x128xf32> to vector<128x128xbf16>
      %16 = arith.index_cast %10 : i32 to index
      %c0_8 = arith.constant 0 : index
      %17 = vector.load %arg3[%16, %c0_8] : memref<256x128xbf16, #tpu.memory_space<vmem>>, vector<128x128xbf16>
      tpu.vector_store %arg3[%16, %c0_8], %15 {strides = array<i32>} : memref<256x128xbf16, #tpu.memory_space<vmem>>, vector<128x128xbf16>,
      %cst_9 = arith.constant dense<0.000000e+00> : vector<128xf32>
      %18 = vector.multi_reduction <add>, %14, %cst_9 [0] : vector<128x128xf32> to vector<128xf32>
      %19 = vector.shape_cast %18 : vector<128xf32> to vector<1x128xf32>
      %20 = arith.addf %arg7, %19 : vector<1x128xf32>
      %21 = arith.mulf %14, %14 : vector<128x128xf32>
      %cst_10 = arith.constant dense<0.000000e+00> : vector<128xf32>
      %22 = vector.multi_reduction <add>, %21, %cst_10 [0] : vector<128x128xf32> to vector<128xf32>
      %23 = vector.shape_cast %22 : vector<128xf32> to vector<1x128xf32>
      %24 = arith.addf %arg8, %23 : vector<1x128xf32>
      scf.yield %20, %24 : vector<1x128xf32>, vector<1x128xf32>
    }
    %c2_i32_0 = arith.constant 2 : i32
    %3 = vector.shape_cast %2#0 : vector<1x128xf32> to vector<1x128xf32>
    %4 = vector.broadcast %3 : vector<1x128xf32> to vector<8x128xf32>
    %c0 = arith.constant 0 : index
    %c0_1 = arith.constant 0 : index
    %5 = vector.load %arg4[%c0, %c0_1] : memref<8x128xf32, #tpu.memory_space<vmem>>, vector<8x128xf32>
    tpu.vector_store %arg4[%c0, %c0_1], %4 {strides = array<i32>} : memref<8x128xf32, #tpu.memory_space<vmem>>, vector<8x128xf32>,
    %6 = vector.shape_cast %2#1 : vector<1x128xf32> to vector<1x128xf32>
    %7 = vector.broadcast %6 : vector<1x128xf32> to vector<8x128xf32>
    %c0_2 = arith.constant 0 : index
    %c0_3 = arith.constant 0 : index
    %8 = vector.load %arg5[%c0_2, %c0_3] : memref<8x128xf32, #tpu.memory_space<vmem>>, vector<8x128xf32>
    tpu.vector_store %arg5[%c0_2, %c0_3], %7 {strides = array<i32>} : memref<8x128xf32, #tpu.memory_space<vmem>>, vector<8x128xf32>,
    return
  }
  func.func @transform_0(%arg0: i32) -> (i32, i32) {
    %c0_i32 = arith.constant 0 : i32
    %c0_i32_0 = arith.constant 0 : i32
    return %arg0, %c0_i32 : i32, i32
  }
  func.func @transform_1(%arg0: i32) -> (i32, i32) {
    %c0_i32 = arith.constant 0 : i32
    %c0_i32_0 = arith.constant 0 : i32
    %c0_i32_1 = arith.constant 0 : i32
    return %c0_i32, %c0_i32_0 : i32, i32
  }
  func.func @transform_2(%arg0: i32) -> (i32, i32) {
    %c0_i32 = arith.constant 0 : i32
    %c0_i32_0 = arith.constant 0 : i32
    return %arg0, %c0_i32 : i32, i32
  }
  func.func @transform_3(%arg0: i32) -> (i32, i32) {
    %c0_i32 = arith.constant 0 : i32
    %c0_i32_0 = arith.constant 0 : i32
    return %arg0, %c0_i32 : i32, i32
  }
  func.func @transform_4(%arg0: i32) -> (i32, i32) {
    %c0_i32 = arith.constant 0 : i32
    %c0_i32_0 = arith.constant 0 : i32
    return %arg0, %c0_i32 : i32, i32
  }
}

</mosaic_0001>

<llo_original>
// kernel: tpu_custom_call.1
$region0: #{tpu_custom_call.1}
  #allocation0 [shape = 'u32[]', space=smem, size = 0x4, offset = 0x4, fixed_abs, tag = 'smem constant byte address 0x4 - core index']
  #allocation1 [shape = 'u32[144,128]{1,0:T(1,128)}', space=vmem, size = 0x12000, scoped, tag = 'internal scratch']
  %s0 = inlined_call_operand.hbm [shape: bf16[512,128], index: 0, kind: input, shape index: {}]
  %s1 = inlined_call_operand.hbm [shape: bf16[128,128], index: 1, kind: input, shape index: {}]
  %s2 = inlined_call_operand.hbm [shape: bf16[512,128], index: 2, kind: output, shape index: {0}]
  %s3 = inlined_call_operand.hbm [shape: f32[16,128], index: 3, kind: output, shape index: {1}]
  %s4 = inlined_call_operand.hbm [shape: f32[16,128], index: 4, kind: output, shape index: {2}]
  %5 = xla_tuple %s2, %s3, %s4
  %s6 = sld [smem:[#allocation0]]
  $region72: #{tpu_custom_call.1} parent=0
    _
  %s8 = ssub.s32 1, %s6
  %s9 = scalar_select 0, %s8, %s6
  $region1: #{tpu_custom_call.1} parent=0
    #allocation2 [shape = 'u8[131072]{0}', space=vmem, size = 0x20000, scoped, tag = 'input window, operand 0']
    #allocation3 [shape = 's32[2]{0}', space=sflag, size = 0x8, scoped, tag = 'scoped memory for tpu_custom_call.1']
    #allocation4 [shape = 's32[2]{0}', space=sflag, size = 0x8, scoped, tag = 'scoped memory for tpu_custom_call.1']
    #allocation5 [shape = 'u8[32768]{0}', space=vmem, size = 0x8000, scoped, tag = 'input window, operand 1, single buffered']
    #allocation6 [shape = 's32[1]{0}', space=sflag, size = 0x4, scoped, tag = 'scoped memory for tpu_custom_call.1']
    #allocation7 [shape = 'u8[131072]{0}', space=vmem, size = 0x20000, scoped, tag = 'output window, operand 0']
    #allocation8 [shape = 'u8[8192]{0}', space=vmem, size = 0x2000, scoped, tag = 'output window, operand 1']
    #allocation9 [shape = 's32[2]{0}', space=sflag, size = 0x8, scoped, tag = 'scoped memory for tpu_custom_call.1']
    #allocation10 [shape = 'u8[8192]{0}', space=vmem, size = 0x2000, scoped, tag = 'output window, operand 2']
    %10 = vsyncpa [#allocation3], 0
    %s11 = scalar_lea.sflag [#allocation3], 1
    %12 = vsyncpa %s11, 0
    %13 = vsyncpa [#allocation6], 0
    %14 = vsyncpa [#allocation4], 0
    %s15 = scalar_lea.sflag [#allocation4], 1
    %16 = vsyncpa %s15, 0
    %17 = vsyncpa [#allocation9], 0
    %s18 = scalar_lea.sflag [#allocation9], 1
    %19 = vsyncpa %s18, 0
    loop: start=0, step=1, limit=4
    $region2: #{tpu_custom_call.1} parent=1 // loop_pre_header
      _
    $region3: #{tpu_custom_call.1} parent=1 // loop_header
      %s21 = sphi 0, %s25
      %p22 = scmp.ge.s32.totalorder %s21, 4
      %s31 = sphi 0, %s33
      %s34 = sphi 0, %s31
      %s35 = sphi 0, %s34
      %s51 = sphi 0, %s35
      %s55 = sphi 0, %s55
      %s57 = sphi 0, %s55
      %s58 = sphi 0, %s57
      %s72 = sphi 0, %s58
      %s78 = sphi 0, %s80
      %s81 = sphi 0, %s78
      %s82 = sphi 0, %s81
      %s98 = sphi 0, %s82
      %s104 = sphi 0, %s106
      %s107 = sphi 0, %s104
      %s108 = sphi 0, %s107
      %s124 = sphi 0, %s108
      %s130 = sphi 0, %s132
      %s133 = sphi 0, %s130
      %s134 = sphi 0, %s133
      %s150 = sphi 0, %s134
    $region4: #{tpu_custom_call.1} parent=1 // loop_header_branch
      %24 = sbr.rel (%p22) target = $region8
    $region5: #{tpu_custom_call.1} parent=1 // loop_body
      %s26 = ssub.s32 %s21, 1
      %s27 = ssub.s32 %s21, 2
      %s28 = sadd.s32 %s21, 1
      %s29 = ssub.s32 %s21, %s28
      %p30 = scmp.eq.s32.totalorder %s29, 0
      %s32 = sadd.s32 %s31, 1
      %s33 = scalar_select %p30, %s31, %s32
      %p36 = pneg %p30
      %p37 = scmp.eq.s32.totalorder %s21, 1
      %p38 = por %p36, %p37
      %p39 = scmp.ne.s32.totalorder %s31, %s34
      %p40 = scmp.eq.s32.totalorder %s21, 0
      %p41 = por %p39, %p40
      %p42 = scmp.ne.s32.totalorder %s31, %s34
      %p43 = scmp.eq.s32.totalorder %s26, 1
      %p44 = por %p42, %p43
      %p45 = scmp.ne.s32.totalorder %s34, %s35
      %p46 = scmp.eq.s32.totalorder %s26, 0
      %p47 = por %p45, %p46
      %p48 = scmp.ne.s32.totalorder %s34, %s35
      %p49 = scmp.eq.s32.totalorder %s27, 1
      %p50 = por %p48, %p49
      %p52 = scmp.ne.s32.totalorder %s35, %s51
      %p53 = scmp.eq.s32.totalorder %s27, 0
      %p54 = por %p52, %p53
      %s56 = sadd.s32 %s55, 1
      %p59 = scmp.eq.s32.totalorder %s21, 1
      %p60 = scmp.ne.s32.totalorder %s55, %s57
      %p61 = scmp.eq.s32.totalorder %s21, 0
      %p62 = por %p60, %p61
      %p63 = scmp.ne.s32.totalorder %s55, %s57
      %p64 = scmp.eq.s32.totalorder %s26, 1
      %p65 = por %p63, %p64
      %p66 = scmp.ne.s32.totalorder %s57, %s58
      %p67 = scmp.eq.s32.totalorder %s26, 0
      %p68 = por %p66, %p67
      %p69 = scmp.ne.s32.totalorder %s57, %s58
      %p70 = scmp.eq.s32.totalorder %s27, 1
      %p71 = por %p69, %p70
      %p73 = scmp.ne.s32.totalorder %s58, %s72
      %p74 = scmp.eq.s32.totalorder %s27, 0
      %p75 = por %p73, %p74
      %s76 = ssub.s32 %s21, %s28
      %p77 = scmp.eq.s32.totalorder %s76, 0
      %s79 = sadd.s32 %s78, 1
      %s80 = scalar_select %p77, %s78, %s79
      %p83 = pneg %p77
      %p84 = scmp.eq.s32.totalorder %s21, 1
      %p85 = por %p83, %p84
      %p86 = scmp.ne.s32.totalorder %s78, %s81
      %p87 = scmp.eq.s32.totalorder %s21, 0
      %p88 = por %p86, %p87
      %p89 = scmp.ne.s32.totalorder %s78, %s81
      %p90 = scmp.eq.s32.totalorder %s26, 1
      %p91 = por %p89, %p90
      %p92 = scmp.ne.s32.totalorder %s81, %s82
      %p93 = scmp.eq.s32.totalorder %s26, 0
      %p94 = por %p92, %p93
      %p95 = scmp.ne.s32.totalorder %s81, %s82
      %p96 = scmp.eq.s32.totalorder %s27, 1
      %p97 = por %p95, %p96
      %p99 = scmp.ne.s32.totalorder %s82, %s98
      %p100 = scmp.eq.s32.totalorder %s27, 0
      %p101 = por %p99, %p100
      %s102 = ssub.s32 %s21, %s28
      %p103 = scmp.eq.s32.totalorder %s102, 0
      %s105 = sadd.s32 %s104, 1
      %s106 = scalar_select %p103, %s104, %s105
      %p109 = pneg %p103
      %p110 = scmp.eq.s32.totalorder %s21, 1
      %p111 = por %p109, %p110
      %p112 = scmp.ne.s32.totalorder %s104, %s107
      %p113 = scmp.eq.s32.totalorder %s21, 0
      %p114 = por %p112, %p113
      %p115 = scmp.ne.s32.totalorder %s104, %s107
      %p116 = scmp.eq.s32.totalorder %s26, 1
      %p117 = por %p115, %p116
      %p118 = scmp.ne.s32.totalorder %s107, %s108
      %p119 = scmp.eq.s32.totalorder %s26, 0
      %p120 = por %p118, %p119
      %p121 = scmp.ne.s32.totalorder %s107, %s108
      %p122 = scmp.eq.s32.totalorder %s27, 1
      %p123 = por %p121, %p122
      %p125 = scmp.ne.s32.totalorder %s108, %s124
      %p126 = scmp.eq.s32.totalorder %s27, 0
      %p127 = por %p125, %p126
      %s128 = ssub.s32 %s21, %s28
      %p129 = scmp.eq.s32.totalorder %s128, 0
      %s131 = sadd.s32 %s130, 1
      %s132 = scalar_select %p129, %s130, %s131
      %p135 = pneg %p129
      %p136 = scmp.eq.s32.totalorder %s21, 1
      %p137 = por %p135, %p136
      %p138 = scmp.ne.s32.totalorder %s130, %s133
      %p139 = scmp.eq.s32.totalorder %s21, 0
      %p140 = por %p138, %p139
      %p141 = scmp.ne.s32.totalorder %s130, %s133
      %p142 = scmp.eq.s32.totalorder %s26, 1
      %p143 = por %p141, %p142
      %p144 = scmp.ne.s32.totalorder %s133, %s134
      %p145 = scmp.eq.s32.totalorder %s26, 0
      %p146 = por %p144, %p145
      %p147 = scmp.ne.s32.totalorder %s133, %s134
      %p148 = scmp.eq.s32.totalorder %s27, 1
      %p149 = por %p147, %p148
      %p151 = scmp.ne.s32.totalorder %s134, %s150
      %p152 = scmp.eq.s32.totalorder %s27, 0
      %p153 = por %p151, %p152
      %p154 = scmp.le.s32.totalorder 1, %s21
      %p155 = scmp.lt.s32.totalorder %s21, 3
      %p156 = pnand %p154, %p155
      %p157 = pneg %p156
      // Predicated region
      $region9: #{tpu_custom_call.1} parent=5 // pred_check
        _
      $region10: #{tpu_custom_call.1} parent=5 // pred_check_branch
        %159 = sbr.rel (%p156) target = $region12
      $region11: #{tpu_custom_call.1} parent=5 // pred_region
        %s160 = ssub.s32 %s21, 1
        // Predicated region
        $region13: #{tpu_custom_call.1} parent=11 // pred_check
          %p161 = pneg %p68
        $region14: #{tpu_custom_call.1} parent=11 // pred_check_branch
          %163 = sbr.rel (%p161) target = $region16
        $region15: #{tpu_custom_call.1} parent=11 // pred_region
          %s165 = ssub.s32 1024, 1024
          %166 = vsyncadd [#allocation6], %s165
          %s167 = sshll.u32 [#allocation5], 4
          %s168 = int_to_ptr.vmem [resolvable:$true] %s167
          %173 = dma.hbm_to_vmem [thread:$0]  %s1, 1024, %s168, [#allocation6], 64, 64, 4
        $region16: #{tpu_custom_call.1} parent=11 // pred_fallthru
          _
      $region12: #{tpu_custom_call.1} parent=5 // pred_fallthru
        _
      %p174 = scmp.lt.s32.totalorder %s21, 2
      // Predicated region
      $region17: #{tpu_custom_call.1} parent=5 // pred_check
        %p175 = pneg %p174
      $region18: #{tpu_custom_call.1} parent=5 // pred_check_branch
        %177 = sbr.rel (%p175) target = $region20
      $region19: #{tpu_custom_call.1} parent=5 // pred_region
        // Predicated region
        $region21: #{tpu_custom_call.1} parent=19 // pred_check
          %p178 = pneg %p41
        $region22: #{tpu_custom_call.1} parent=19 // pred_check_branch
          %180 = sbr.rel (%p178) target = $region24
        $region23: #{tpu_custom_call.1} parent=19 // pred_region
          %s181 = sand.u32 %s31, 1
          %s182 = scalar_lea.sflag [#allocation3], %s181
          %s183 = sand.u32 %s31, 1
          %s184 = smul.addr %s183, 128
          %s185 = scalar_lea.vmem [#allocation2], %s184
          %s186 = smul.u32 32, %s21
          %s188 = ssub.s32 2048, 2048
          %189 = vsyncadd %s182, %s188
          %s190 = smul.addr %s186, 64
          %s191 = scalar_lea.hbm %s0, %s190
          %s192 = sshll.u32 %s185, 4
          %s193 = int_to_ptr.vmem [resolvable:$true] %s192
          %198 = dma.hbm_to_vmem [thread:$0]  %s191, 2048, %s193, %s182, 64, 64, 4
        $region24: #{tpu_custom_call.1} parent=19 // pred_fallthru
          _
      $region20: #{tpu_custom_call.1} parent=5 // pred_fallthru
        _
      %p199 = scmp.le.s32.totalorder 1, %s21
      %p200 = scmp.lt.s32.totalorder %s21, 3
      %p201 = pnand %p199, %p200
      %p202 = pneg %p201
      // Predicated region
      $region25: #{tpu_custom_call.1} parent=5 // pred_check
        _
      $region26: #{tpu_custom_call.1} parent=5 // pred_check_branch
        %204 = sbr.rel (%p201) target = $region28
      $region27: #{tpu_custom_call.1} parent=5 // pred_region
        %s205 = ssub.s32 %s21, 1
        %s206 = sand.u32 %s34, 1
        %s207 = scalar_lea.sflag [#allocation3], %s206
        %s208 = sand.u32 %s34, 1
        %s209 = smul.addr %s208, 128
        %s210 = scalar_lea.vmem [#allocation2], %s209
        // Predicated region
        $region29: #{tpu_custom_call.1} parent=27 // pred_check
          %p211 = pneg %p47
        $region30: #{tpu_custom_call.1} parent=27 // pred_check_branch
          %213 = sbr.rel (%p211) target = $region32
        $region31: #{tpu_custom_call.1} parent=27 // pred_region
          %214 = dma.done %s207, 2048
        $region32: #{tpu_custom_call.1} parent=27 // pred_fallthru
          _
        // Predicated region
        $region33: #{tpu_custom_call.1} parent=27 // pred_check
          %p215 = pneg %p68
        $region34: #{tpu_custom_call.1} parent=27 // pred_check_branch
          %217 = sbr.rel (%p215) target = $region36
        $region35: #{tpu_custom_call.1} parent=27 // pred_region
          %218 = dma.done [#allocation6], 1024
        $region36: #{tpu_custom_call.1} parent=27 // pred_fallthru
          _
        %s219 = sand.u32 %s34, 1
        %s220 = scalar_lea.sflag [#allocation3], %s219
        %s221 = sand.u32 %s34, 1
        %s222 = smul.addr %s221, 128
        %s223 = scalar_lea.vmem [#allocation2], %s222
        %p224 = pneg %p47
        %p225 = pneg %p44
        %p226 = pneg %p68
        %p227 = pneg %p65
        %p228 = pneg %p94
        %p229 = pneg %p91
        %s230 = sand.u32 %s81, 1
        %s231 = scalar_lea.sflag [#allocation4], %s230
        %s232 = sand.u32 %s81, 1
        %s233 = smul.addr %s232, 128
        %s234 = scalar_lea.vmem [#allocation7], %s233
        %p235 = pneg %p120
        %p236 = pneg %p117
        %s237 = sand.u32 %s26, 1
        %s238 = scalar_lea.sflag [#allocation9], %s237
        %s239 = sand.u32 %s107, 1
        %s240 = smul.addr %s239, 8
        %s241 = scalar_lea.vmem [#allocation8], %s240
        %p242 = pneg %p146
        %p243 = pneg %p143
        %s244 = sand.u32 %s26, 1
        %s245 = scalar_lea.sflag [#allocation9], %s244
        %s246 = sand.u32 %s133, 1
        %s247 = smul.addr %s246, 8
        %s248 = scalar_lea.vmem [#allocation10], %s247
        %s249 = smul.u32 32, %s26
        %s250 = smul.u32 32, %s26
        loop: start=0, step=1, limit=2
        $region37: #{tpu_custom_call.1} parent=27 // loop_pre_header
          _
        $region38: #{tpu_custom_call.1} parent=27 // loop_header
          %s253 = sphi 0, %s257
          %p254 = scmp.ge.s32.totalorder %s253, 2
          %v258 = vphi 0.0, %v593
          %v259 = vphi 0.0, %v631
        $region39: #{tpu_custom_call.1} parent=27 // loop_header_branch
          %256 = sbr.rel (%p254) target = $region43
        $region40: #{tpu_custom_call.1} parent=27 // loop_body
          %s260 = smul.u32 %s253, 128
          %s261 = sshra.s32 %s260, 3
          %s262 = sand.u32 %s260, 7
          %s263 = smul.addr %s261, 4
          %s264 = scalar_lea.vmem %s210, %s263 [#allocation2]
          %v265 = vld [vmem:[%s264] sm:$0xf]
          %v266 = vld [vmem:[%s264 + $0x4] sm:$0xf]
          %v267 = vld [vmem:[%s264 + $0x8] sm:$0xf]
          %v268 = vld [vmem:[%s264 + $0xc] sm:$0xf]
          %v269 = vld [vmem:[%s264 + $0x10] sm:$0xf]
          %v270 = vld [vmem:[%s264 + $0x14] sm:$0xf]
          %v271 = vld [vmem:[%s264 + $0x18] sm:$0xf]
          %v272 = vld [vmem:[%s264 + $0x1c] sm:$0xf]
          %v273 = vld [vmem:[%s264 + $0x20] sm:$0xf]
          %v274 = vld [vmem:[%s264 + $0x24] sm:$0xf]
          %v275 = vld [vmem:[%s264 + $0x28] sm:$0xf]
          %v276 = vld [vmem:[%s264 + $0x2c] sm:$0xf]
          %v277 = vld [vmem:[%s264 + $0x30] sm:$0xf]
          %v278 = vld [vmem:[%s264 + $0x34] sm:$0xf]
          %v279 = vld [vmem:[%s264 + $0x38] sm:$0xf]
          %v280 = vld [vmem:[%s264 + $0x3c] sm:$0xf]
          %v281 = vld [vmem:[#allocation5] sm:$0xf]
          %v282 = vld [vmem:[#allocation5 + $0x4] sm:$0xf]
          %v283 = vld [vmem:[#allocation5 + $0x8] sm:$0xf]
          %v284 = vld [vmem:[#allocation5 + $0xc] sm:$0xf]
          %v285 = vld [vmem:[#allocation5 + $0x10] sm:$0xf]
          %v286 = vld [vmem:[#allocation5 + $0x14] sm:$0xf]
          %v287 = vld [vmem:[#allocation5 + $0x18] sm:$0xf]
          %v288 = vld [vmem:[#allocation5 + $0x1c] sm:$0xf]
          %v289 = vld [vmem:[#allocation5 + $0x20] sm:$0xf]
          %v290 = vld [vmem:[#allocation5 + $0x24] sm:$0xf]
          %v291 = vld [vmem:[#allocation5 + $0x28] sm:$0xf]
          %v292 = vld [vmem:[#allocation5 + $0x2c] sm:$0xf]
          %v293 = vld [vmem:[#allocation5 + $0x30] sm:$0xf]
          %v294 = vld [vmem:[#allocation5 + $0x34] sm:$0xf]
          %v295 = vld [vmem:[#allocation5 + $0x38] sm:$0xf]
          %v296 = vld [vmem:[#allocation5 + $0x3c] sm:$0xf]
          %v313 = vunpack.c.l.b16 %v265
          %v314 = vunpack.c.l.b16 %v266
          %v315 = vunpack.c.l.b16 %v267
          %v316 = vunpack.c.l.b16 %v268
          %v317 = vunpack.c.l.b16 %v269
          %v318 = vunpack.c.l.b16 %v270
          %v319 = vunpack.c.l.b16 %v271
          %v320 = vunpack.c.l.b16 %v272
          %v321 = vunpack.c.l.b16 %v273
          %v322 = vunpack.c.l.b16 %v274
          %v323 = vunpack.c.l.b16 %v275
          %v324 = vunpack.c.l.b16 %v276
          %v325 = vunpack.c.l.b16 %v277
          %v326 = vunpack.c.l.b16 %v278
          %v327 = vunpack.c.l.b16 %v279
          %v328 = vunpack.c.l.b16 %v280
          %v329 = vpack.c.b16 %v314, %v313
          %v330 = vpack.c.b16 %v316, %v315
          %v331 = vpack.c.b16 %v318, %v317
          %v332 = vpack.c.b16 %v320, %v319
          %v333 = vpack.c.b16 %v322, %v321
          %v334 = vpack.c.b16 %v324, %v323
          %v335 = vpack.c.b16 %v326, %v325
          %v336 = vpack.c.b16 %v328, %v327
          %v361 = vunpack.c.l.b16 %v281
          %v362 = vunpack.c.l.b16 %v282
          %v363 = vunpack.c.l.b16 %v283
          %v364 = vunpack.c.l.b16 %v284
          %v365 = vunpack.c.l.b16 %v285
          %v366 = vunpack.c.l.b16 %v286
          %v367 = vunpack.c.l.b16 %v287
          %v368 = vunpack.c.l.b16 %v288
          %v369 = vunpack.c.l.b16 %v289
          %v370 = vunpack.c.l.b16 %v290
          %v371 = vunpack.c.l.b16 %v291
          %v372 = vunpack.c.l.b16 %v292
          %v373 = vunpack.c.l.b16 %v293
          %v374 = vunpack.c.l.b16 %v294
          %v375 = vunpack.c.l.b16 %v295
          %v376 = vunpack.c.l.b16 %v296
          %v377 = vpack.c.b16 %v362, %v361
          %v378 = vpack.c.b16 %v364, %v363
          %v379 = vpack.c.b16 %v366, %v365
          %v380 = vpack.c.b16 %v368, %v367
          %v381 = vpack.c.b16 %v370, %v369
          %v382 = vpack.c.b16 %v372, %v371
          %v383 = vpack.c.b16 %v374, %v373
          %v384 = vpack.c.b16 %v376, %v375
          %393 = vmatprep.subr.bf16.mxu0 0
          %394 = vmatpush1.bf16.msra.mxu0 %v377
          %395 = vmatprep.subr.bf16.mxu0 0
          %396 = vmatpush1.bf16.msra.mxu0 %v378
          %397 = vmatprep.subr.bf16.mxu0 0
          %398 = vmatpush1.bf16.msra.mxu0 %v379
          %399 = vmatprep.subr.bf16.mxu0 0
          %400 = vmatpush1.bf16.msra.mxu0 %v380
          %401 = vmatprep.subr.bf16.mxu0 0
          %402 = vmatpush1.bf16.msra.mxu0 %v381
          %403 = vmatprep.subr.bf16.mxu0 0
          %404 = vmatpush1.bf16.msra.mxu0 %v382
          %405 = vmatprep.subr.bf16.mxu0 0
          %406 = vmatpush1.bf16.msra.mxu0 %v383
          %407 = vmatprep.subr.bf16.mxu0 0
          %408 = vmatpush1.bf16.msra.mxu0 %v384
          %409 = vmatprep.subr.bf16.mxu0 0
          %410 = vmatpush1.bf16.msra.mxu0 0
          %411 = vmatprep.subr.bf16.mxu0 0
          %412 = vmatpush1.bf16.msra.mxu0 0
          %413 = vmatprep.subr.bf16.mxu0 0
          %414 = vmatpush1.bf16.msra.mxu0 0
          %415 = vmatprep.subr.bf16.mxu0 0
          %416 = vmatpush1.bf16.msra.mxu0 0
          %417 = vmatprep.subr.bf16.mxu0 0
          %418 = vmatpush1.bf16.msra.mxu0 0
          %419 = vmatprep.subr.bf16.mxu0 0
          %420 = vmatpush1.bf16.msra.mxu0 0
          %421 = vmatprep.subr.bf16.mxu0 0
          %422 = vmatpush1.bf16.msra.mxu0 0
          %423 = vmatprep.subr.bf16.mxu0 0
          %424 = vmatpush1.bf16.msra.mxu0 0
          %425 = vmatprep.mubr.bf16.mxu0 0
          %426 = vmatmul.mubr.bf16.gmra.mrb[0].mxu0 %v329
          %v427 = vpop.f32.mrb[0].mxu0
          %v428 = vadd.f32 0.0, %v427
          %v429 = vpop.f32.mrb[0].mxu0
          %v430 = vpop.f32.mrb[0].mxu0
          %v431 = vadd.f32 0.0, %v430
          %v432 = vpop.f32.mrb[0].mxu0
          %433 = vmatprep.mubr.bf16.mxu0 0
          %434 = vmatmul.mubr.bf16.gmra.mrb[0].mxu0 %v330
          %v435 = vpop.f32.mrb[0].mxu0
          %v436 = vadd.f32 0.0, %v435
          %v437 = vpop.f32.mrb[0].mxu0
          %v438 = vpop.f32.mrb[0].mxu0
          %v439 = vadd.f32 0.0, %v438
          %v440 = vpop.f32.mrb[0].mxu0
          %441 = vmatprep.mubr.bf16.mxu0 0
          %442 = vmatmul.mubr.bf16.gmra.mrb[0].mxu0 %v331
          %v443 = vpop.f32.mrb[0].mxu0
          %v444 = vadd.f32 0.0, %v443
          %v445 = vpop.f32.mrb[0].mxu0
          %v446 = vpop.f32.mrb[0].mxu0
          %v447 = vadd.f32 0.0, %v446
          %v448 = vpop.f32.mrb[0].mxu0
          %449 = vmatprep.mubr.bf16.mxu0 0
          %450 = vmatmul.mubr.bf16.gmra.mrb[0].mxu0 %v332
          %v451 = vpop.f32.mrb[0].mxu0
          %v452 = vadd.f32 0.0, %v451
          %v453 = vpop.f32.mrb[0].mxu0
          %v454 = vpop.f32.mrb[0].mxu0
          %v455 = vadd.f32 0.0, %v454
          %v456 = vpop.f32.mrb[0].mxu0
          %457 = vmatprep.mubr.bf16.mxu0 0
          %458 = vmatmul.mubr.bf16.gmra.mrb[0].mxu0 %v333
          %v459 = vpop.f32.mrb[0].mxu0
          %v460 = vadd.f32 0.0, %v459
          %v461 = vpop.f32.mrb[0].mxu0
          %v462 = vpop.f32.mrb[0].mxu0
          %v463 = vadd.f32 0.0, %v462
          %v464 = vpop.f32.mrb[0].mxu0
          %465 = vmatprep.mubr.bf16.mxu0 0
          %466 = vmatmul.mubr.bf16.gmra.mrb[0].mxu0 %v334
          %v467 = vpop.f32.mrb[0].mxu0
          %v468 = vadd.f32 0.0, %v467
          %v469 = vpop.f32.mrb[0].mxu0
          %v470 = vpop.f32.mrb[0].mxu0
          %v471 = vadd.f32 0.0, %v470
          %v472 = vpop.f32.mrb[0].mxu0
          %473 = vmatprep.mubr.bf16.mxu0 0
          %474 = vmatmul.mubr.bf16.gmra.mrb[0].mxu0 %v335
          %v475 = vpop.f32.mrb[0].mxu0
          %v476 = vadd.f32 0.0, %v475
          %v477 = vpop.f32.mrb[0].mxu0
          %v478 = vpop.f32.mrb[0].mxu0
          %v479 = vadd.f32 0.0, %v478
          %v480 = vpop.f32.mrb[0].mxu0
          %481 = vmatprep.mubr.bf16.mxu0 0
          %482 = vmatmul.mubr.bf16.gmra.mrb[0].mxu0 %v336
          %v483 = vpop.f32.mrb[0].mxu0
          %v484 = vadd.f32 0.0, %v483
          %v485 = vpop.f32.mrb[0].mxu0
          %v486 = vpop.f32.mrb[0].mxu0
          %v487 = vadd.f32 0.0, %v486
          %v488 = vpop.f32.mrb[0].mxu0
          %489 = vdwg.mxu0
          %v490 = vpack.c.bf16 %v431, %v428
          %v491 = vpack.c.bf16 %v439, %v436
          %v492 = vpack.c.bf16 %v447, %v444
          %v493 = vpack.c.bf16 %v455, %v452
          %v494 = vpack.c.bf16 %v463, %v460
          %v495 = vpack.c.bf16 %v471, %v468
          %v496 = vpack.c.bf16 %v479, %v476
          %v497 = vpack.c.bf16 %v487, %v484
          %v506 = vunpack.c.l.b16 %v490
          %v507 = vunpack.c.h.b16 %v490
          %v508 = vunpack.c.l.b16 %v491
          %v509 = vunpack.c.h.b16 %v491
          %v510 = vunpack.c.l.b16 %v492
          %v511 = vunpack.c.h.b16 %v492
          %v512 = vunpack.c.l.b16 %v493
          %v513 = vunpack.c.h.b16 %v493
          %v514 = vunpack.c.l.b16 %v494
          %v515 = vunpack.c.h.b16 %v494
          %v516 = vunpack.c.l.b16 %v495
          %v517 = vunpack.c.h.b16 %v495
          %v518 = vunpack.c.l.b16 %v496
          %v519 = vunpack.c.h.b16 %v496
          %v520 = vunpack.c.l.b16 %v497
          %v521 = vunpack.c.h.b16 %v497
          %v522 = vpack.c.b16 %v506, %v506
          %v523 = vpack.c.b16 %v507, %v507
          %v524 = vpack.c.b16 %v508, %v508
          %v525 = vpack.c.b16 %v509, %v509
          %v526 = vpack.c.b16 %v510, %v510
          %v527 = vpack.c.b16 %v511, %v511
          %v528 = vpack.c.b16 %v512, %v512
          %v529 = vpack.c.b16 %v513, %v513
          %v530 = vpack.c.b16 %v514, %v514
          %v531 = vpack.c.b16 %v515, %v515
          %v532 = vpack.c.b16 %v516, %v516
          %v533 = vpack.c.b16 %v517, %v517
          %v534 = vpack.c.b16 %v518, %v518
          %v535 = vpack.c.b16 %v519, %v519
          %v536 = vpack.c.b16 %v520, %v520
          %v537 = vpack.c.b16 %v521, %v521
          %s554 = smul.addr %s261, 4
          %s555 = scalar_lea.vmem %s234, %s554 [#allocation7]
          %556 = vst [vmem:[%s555] sm:$0xf] %v522
          %557 = vst [vmem:[%s555 + $0x4] sm:$0xf] %v523
          %558 = vst [vmem:[%s555 + $0x8] sm:$0xf] %v524
          %559 = vst [vmem:[%s555 + $0xc] sm:$0xf] %v525
          %560 = vst [vmem:[%s555 + $0x10] sm:$0xf] %v526
          %561 = vst [vmem:[%s555 + $0x14] sm:$0xf] %v527
          %562 = vst [vmem:[%s555 + $0x18] sm:$0xf] %v528
          %563 = vst [vmem:[%s555 + $0x1c] sm:$0xf] %v529
          %564 = vst [vmem:[%s555 + $0x20] sm:$0xf] %v530
          %565 = vst [vmem:[%s555 + $0x24] sm:$0xf] %v531
          %566 = vst [vmem:[%s555 + $0x28] sm:$0xf] %v532
          %567 = vst [vmem:[%s555 + $0x2c] sm:$0xf] %v533
          %568 = vst [vmem:[%s555 + $0x30] sm:$0xf] %v534
          %569 = vst [vmem:[%s555 + $0x34] sm:$0xf] %v535
          %570 = vst [vmem:[%s555 + $0x38] sm:$0xf] %v536
          %571 = vst [vmem:[%s555 + $0x3c] sm:$0xf] %v537
          %v572 = vadd.f32 %v428, %v431
          %v573 = vadd.f32 %v572, %v436
          %v574 = vadd.f32 %v573, %v439
          %v575 = vadd.f32 %v574, %v444
          %v576 = vadd.f32 %v575, %v447
          %v577 = vadd.f32 %v576, %v452
          %v578 = vadd.f32 %v577, %v455
          %v579 = vadd.f32 %v578, %v460
          %v580 = vadd.f32 %v579, %v463
          %v581 = vadd.f32 %v580, %v468
          %v582 = vadd.f32 %v581, %v471
          %v583 = vadd.f32 %v582, %v476
          %v584 = vadd.f32 %v583, %v479
          %v585 = vadd.f32 %v584, %v484
          %v586 = vadd.f32 %v585, %v487
          %v587 = vrot.slane %v586, 4
          %v588 = vadd.f32 %v586, %v587
          %v589 = vrot.slane %v588, 2
          %v590 = vadd.f32 %v588, %v589
          %v591 = vrot.slane %v590, 1
          %v592 = vadd.f32 %v590, %v591
          %v593 = vadd.f32 %v258, %v592
          %v594 = vmul.f32 %v428, %v428
          %v595 = vmul.f32 %v431, %v431
          %v596 = vmul.f32 %v436, %v436
          %v597 = vmul.f32 %v439, %v439
          %v598 = vmul.f32 %v444, %v444
          %v599 = vmul.f32 %v447, %v447
          %v600 = vmul.f32 %v452, %v452
          %v601 = vmul.f32 %v455, %v455
          %v602 = vmul.f32 %v460, %v460
          %v603 = vmul.f32 %v463, %v463
          %v604 = vmul.f32 %v468, %v468
          %v605 = vmul.f32 %v471, %v471
          %v606 = vmul.f32 %v476, %v476
          %v607 = vmul.f32 %v479, %v479
          %v608 = vmul.f32 %v484, %v484
          %v609 = vmul.f32 %v487, %v487
          %v610 = vadd.f32 %v594, %v595
          %v611 = vadd.f32 %v610, %v596
          %v612 = vadd.f32 %v611, %v597
          %v613 = vadd.f32 %v612, %v598
          %v614 = vadd.f32 %v613, %v599
          %v615 = vadd.f32 %v614, %v600
          %v616 = vadd.f32 %v615, %v601
          %v617 = vadd.f32 %v616, %v602
          %v618 = vadd.f32 %v617, %v603
          %v619 = vadd.f32 %v618, %v604
          %v620 = vadd.f32 %v619, %v605
          %v621 = vadd.f32 %v620, %v606
          %v622 = vadd.f32 %v621, %v607
          %v623 = vadd.f32 %v622, %v608
          %v624 = vadd.f32 %v623, %v609
          %v625 = vrot.slane %v624, 4
          %v626 = vadd.f32 %v624, %v625
          %v627 = vrot.slane %v626, 2
          %v628 = vadd.f32 %v626, %v627
          %v629 = vrot.slane %v628, 1
          %v630 = vadd.f32 %v628, %v629
          %v631 = vadd.f32 %v259, %v630
        $region41: #{tpu_custom_call.1} parent=27 // loop_footer
          %s257 = sadd.s32 1, %s253
        $region42: #{tpu_custom_call.1} parent=27 // loop_footer_branch
          %252 = sbr.rel target = $region38
        $region43: #{tpu_custom_call.1} parent=27 // loop_exit
          _
        %632 = vst [vmem:[%s241] sm:$0xff] %v258
        %633 = vst [vmem:[%s248] sm:$0xff] %v259
        %s634 = sand.u32 %s81, 1
        %s635 = scalar_lea.sflag [#allocation4], %s634
        %s636 = sand.u32 %s81, 1
        %s637 = smul.addr %s636, 128
        %s638 = scalar_lea.vmem [#allocation7], %s637
        %s639 = sand.u32 %s26, 1
        %s640 = scalar_lea.sflag [#allocation9], %s639
        %s641 = sand.u32 %s107, 1
        %s642 = smul.addr %s641, 8
        %s643 = scalar_lea.vmem [#allocation8], %s642
        %s644 = sand.u32 %s26, 1
        %s645 = scalar_lea.sflag [#allocation9], %s644
        %s646 = sand.u32 %s133, 1
        %s647 = smul.addr %s646, 8
        %s648 = scalar_lea.vmem [#allocation10], %s647
        // Predicated region
        $region44: #{tpu_custom_call.1} parent=27 // pred_check
          %p649 = pneg %p91
        $region45: #{tpu_custom_call.1} parent=27 // pred_check_branch
          %651 = sbr.rel (%p649) target = $region47
        $region46: #{tpu_custom_call.1} parent=27 // pred_region
          %s652 = smul.u32 32, %s26
          %s654 = ssub.s32 2048, 2048
          %655 = vsyncadd %s635, %s654
          %s656 = smul.addr %s652, 64
          %s657 = scalar_lea.hbm %s2, %s656
          %s658 = sshll.u32 %s638, 4
          %s659 = int_to_ptr.vmem [resolvable:$true] %s658
          %664 = dma.vmem_to_hbm [thread:$0]  %s659, 2048, %s657, %s635, 64, 64, 4
        $region47: #{tpu_custom_call.1} parent=27 // pred_fallthru
          _
        // Predicated region
        $region48: #{tpu_custom_call.1} parent=27 // pred_check
          %p665 = pneg %p117
        $region49: #{tpu_custom_call.1} parent=27 // pred_check_branch
          %667 = sbr.rel (%p665) target = $region51
        $region50: #{tpu_custom_call.1} parent=27 // pred_region
          %s669 = ssub.s32 128, 128
          %670 = vsyncadd %s640, %s669
          %s671 = smul.addr %s26, 128
          %s672 = scalar_lea.hbm %s3, %s671
          %s674 = sshll.u32 %s643, 4
          %s675 = int_to_ptr.vmem [resolvable:$true] %s674
          %677 = dma.vmem_to_hbm [thread:$0]  %s675, 128, %s672, %s640
        $region51: #{tpu_custom_call.1} parent=27 // pred_fallthru
          _
        // Predicated region
        $region52: #{tpu_custom_call.1} parent=27 // pred_check
          %p678 = pneg %p143
        $region53: #{tpu_custom_call.1} parent=27 // pred_check_branch
          %680 = sbr.rel (%p678) target = $region55
        $region54: #{tpu_custom_call.1} parent=27 // pred_region
          %s682 = ssub.s32 128, 128
          %683 = vsyncadd %s645, %s682
          %s684 = smul.addr %s26, 128
          %s685 = scalar_lea.hbm %s4, %s684
          %s687 = sshll.u32 %s648, 4
          %s688 = int_to_ptr.vmem [resolvable:$true] %s687
          %690 = dma.vmem_to_hbm [thread:$0]  %s688, 128, %s685, %s645
        $region55: #{tpu_custom_call.1} parent=27 // pred_fallthru
          _
      $region28: #{tpu_custom_call.1} parent=5 // pred_fallthru
        _
      %p691 = scmp.le.s32.totalorder 2, %s21
      // Predicated region
      $region56: #{tpu_custom_call.1} parent=5 // pred_check
        %p692 = pneg %p691
      $region57: #{tpu_custom_call.1} parent=5 // pred_check_branch
        %694 = sbr.rel (%p692) target = $region59
      $region58: #{tpu_custom_call.1} parent=5 // pred_region
        %s695 = ssub.s32 %s21, 2
        // Predicated region
        $region60: #{tpu_custom_call.1} parent=58 // pred_check
          %p696 = pneg %p97
        $region61: #{tpu_custom_call.1} parent=58 // pred_check_branch
          %698 = sbr.rel (%p696) target = $region63
        $region62: #{tpu_custom_call.1} parent=58 // pred_region
          %s699 = sand.u32 %s82, 1
          %s700 = scalar_lea.sflag [#allocation4], %s699
          %s701 = sand.u32 %s82, 1
          %s702 = smul.addr %s701, 128
          %s703 = scalar_lea.vmem [#allocation7], %s702
          %704 = dma.done %s700, 2048
        $region63: #{tpu_custom_call.1} parent=58 // pred_fallthru
          _
        // Predicated region
        $region64: #{tpu_custom_call.1} parent=58 // pred_check
          %p705 = pneg %p123
        $region65: #{tpu_custom_call.1} parent=58 // pred_check_branch
          %707 = sbr.rel (%p705) target = $region67
        $region66: #{tpu_custom_call.1} parent=58 // pred_region
          %s708 = sand.u32 %s27, 1
          %s709 = scalar_lea.sflag [#allocation9], %s708
          %s710 = sand.u32 %s108, 1
          %s711 = smul.addr %s710, 8
          %s712 = scalar_lea.vmem [#allocation8], %s711
          %713 = dma.done %s709, 128
        $region67: #{tpu_custom_call.1} parent=58 // pred_fallthru
          _
        // Predicated region
        $region68: #{tpu_custom_call.1} parent=58 // pred_check
          %p714 = pneg %p149
        $region69: #{tpu_custom_call.1} parent=58 // pred_check_branch
          %716 = sbr.rel (%p714) target = $region71
        $region70: #{tpu_custom_call.1} parent=58 // pred_region
          %s717 = sand.u32 %s27, 1
          %s718 = scalar_lea.sflag [#allocation9], %s717
          %s719 = sand.u32 %s134, 1
          %s720 = smul.addr %s719, 8
          %s721 = scalar_lea.vmem [#allocation10], %s720
          %722 = dma.done %s718, 128
        $region71: #{tpu_custom_call.1} parent=58 // pred_fallthru
          _
      $region59: #{tpu_custom_call.1} parent=5 // pred_fallthru
        _
    $region6: #{tpu_custom_call.1} parent=1 // loop_footer
      %s25 = sadd.s32 1, %s21
    $region7: #{tpu_custom_call.1} parent=1 // loop_footer_branch
      %20 = sbr.rel target = $region3
    $region8: #{tpu_custom_call.1} parent=1 // loop_exit
      _
    %723 = vsyncpa [#allocation3], 1
    %s724 = scalar_lea.sflag [#allocation3], 1
    %725 = vsyncpa %s724, 1
    %726 = vsyncpa [#allocation6], 1
    %727 = vsyncpa [#allocation4], 1
    %s728 = scalar_lea.sflag [#allocation4], 1
    %729 = vsyncpa %s728, 1
    %730 = vsyncpa [#allocation9], 1
    %s731 = scalar_lea.sflag [#allocation9], 1
    %732 = vsyncpa %s731, 1

</llo_original>
